<compile_context>
chip_gen: v6e
topology: v6e:2x2x1
jax: 0.10.0
libtpu: 0.0.40
codegen_flags: <defaults>
</compile_context>

<pallas_src>
from math import floor

import jax
import jax.numpy as jnp
from jax.experimental import pallas as pl
from jax.experimental.pallas import tpu as pltpu


def _set_scorer_kernel(x_ref, w1_ref, b1_ref, w2_ref, b2_ref, w3_ref, b3_ref,
                       o_ref):
    """Fused packed 3-layer MLP for one tile of packed rows.

    One "packed row" carries `pack` logical rows side-by-side along the lane
    dim; the block-diagonal weights keep per-row computations independent.

    x_ref : (tm_p, pack*d_model)     VMEM f32
    w1_ref: (pack*d_model, pack*H)   VMEM mxu-dtype   b1_ref: (1, pack*H)   VMEM f32
    w2_ref: (pack*H, pack*H2)        VMEM mxu-dtype   b2_ref: (1, pack*H2)  VMEM f32
    w3_ref: (pack*H2, pack)          VMEM mxu-dtype   b3_ref: (1,)          SMEM f32
    o_ref : (tm_p, pack)             VMEM f32
    """
    cdt = w1_ref.dtype                 # MXU operand dtype (f32 exact / bf16 fast)
    x = x_ref[...].astype(cdt)

    # Layer 1 (MXU, f32 accumulate) + bias + ReLU.
    h1 = jnp.dot(x, w1_ref[...], preferred_element_type=jnp.float32)
    h1 = jnp.maximum(h1 + b1_ref[...], 0.0)

    # Layer 2 (MXU) + bias + ReLU.
    h2 = jnp.dot(h1.astype(cdt), w2_ref[...], preferred_element_type=jnp.float32)
    h2 = jnp.maximum(h2 + b2_ref[...], 0.0)

    # Dropout: identity at inference time (module eval mode); nothing to do.

    # Layer 3: block-diagonal (pack*H2, pack) matmul -> one score lane per
    # logical row. HBM-bound after packing, so these pushes are free.
    out = jnp.dot(h2.astype(cdt), w3_ref[...], preferred_element_type=jnp.float32)
    o_ref[...] = (out + b3_ref[0]).astype(o_ref.dtype)


def prepare_set_scorer_params(params, *, mxu_dtype=jnp.float32):
    """One-time weight prep (hoisted out of the forward pass).

    Transposes to [in, out], packs `pack = 128 // d_model` logical rows per
    128-lane vreg by building block-diagonal weights, tiles the biases to the
    packed layout, and optionally casts the matmul operands to bf16 (biases
    stay f32; accumulation is always f32). Returns plain arrays only, so the
    result can be passed through jit.
    """
    w1, b1, w2, b2, w3, b3 = params
    hidden, d_model = w1.shape              # PyTorch convention: (out, in)
    half = w2.shape[0]

    pack = 128 // d_model if (d_model < 128 and 128 % d_model == 0) else 1
    eye = jnp.eye(pack, dtype=jnp.float32)

    w1bd = jnp.kron(eye, w1.T.astype(jnp.float32)).astype(mxu_dtype)  # (p*d, p*H)
    w2bd = jnp.kron(eye, w2.T.astype(jnp.float32)).astype(mxu_dtype)  # (p*H, p*H2)
    w3bd = jnp.kron(eye, w3.T.astype(jnp.float32)).astype(mxu_dtype)  # (p*H2, p)
    b1t = jnp.tile(b1.reshape(1, hidden).astype(jnp.float32), (1, pack))
    b2t = jnp.tile(b2.reshape(1, half).astype(jnp.float32), (1, pack))
    b3r = b3.reshape(1).astype(jnp.float32)                            # SMEM scalar

    return (w1bd, b1t, w2bd, b2t, w3bd, b3r)


def _choose_tile(n_p, tm_p_max):
    """Pick the packed-row tile.

    Small inputs: one block (grid-step overhead dominates any split win).
    Otherwise: near-equal blocks with an even step count so v7x's two
    TensorCores get balanced work under dimension_semantics=("parallel",).
    """
    if n_p <= 512:
        return n_p
    steps = -(-n_p // tm_p_max)          # ceil
    steps += steps % 2                   # even step count for v7x's 2 TCs
    tm_p = -(-n_p // steps)              # balanced block size
    tm_p = -(-tm_p // 8) * 8             # sublane-align
    return min(tm_p, n_p)


def set_scorer_forward(x, prepared, *, tile_rows=8192):
    """x: (..., d_model) float32. Returns (..., 1), matching the nn.Linear stack.

    `prepared` comes from prepare_set_scorer_params. `tile_rows` is measured in
    logical rows (the packed tile is tile_rows // pack packed rows).
    """
    w1bd, b1t, w2bd, b2t, w3bd, b3r = prepared
    d_model = x.shape[-1]
    lead_shape = x.shape[:-1]

    pack = w1bd.shape[0] // d_model
    wx = w1bd.shape[0]                   # pack * d_model
    wh1 = w1bd.shape[1]                  # pack * hidden
    wh2 = w2bd.shape[1]                  # pack * half
    hidden = wh1 // pack
    half = wh2 // pack

    x2d = x.reshape(-1, d_model)
    n = x2d.shape[0]

    # Pack `pack` logical rows per vreg row (free, row-major reshape). Only if
    # n is not a multiple of `pack` do we pay a small pad copy.
    pad = (-n) % pack
    if pad:
        x2d = jnp.pad(x2d, ((0, pad), (0, 0)))
    n_p = (n + pad) // pack
    xp = x2d.reshape(n_p, wx)

    tm_p = _choose_tile(n_p, max(8, tile_rows // pack))
    grid = (pl.cdiv(n_p, tm_p),)

    full = lambda i: (0, 0)              # weights/biases: VMEM-resident across grid

    cost = pl.CostEstimate(
        flops=2 * n * (d_model * hidden + hidden * half + half),
        transcendentals=0,
        bytes_accessed=(n * (d_model + 1) * 4
                        + sum(int(w.size) * w.dtype.itemsize
                              for w in (w1bd, b1t, w2bd, b2t, w3bd, b3r))),
    )

    out_p = pl.pallas_call(
        _set_scorer_kernel,
        out_shape=jax.ShapeDtypeStruct((n_p, pack), x.dtype),
        grid_spec=pltpu.PrefetchScalarGridSpec(
            num_scalar_prefetch=0,
            grid=grid,
            in_specs=[
                pl.BlockSpec((tm_p, wx), lambda i: (i, 0)),         # packed x rows
                pl.BlockSpec((wx, wh1), full),                      # W1 block-diag
                pl.BlockSpec((1, wh1), full),                       # b1 (tiled)
                pl.BlockSpec((wh1, wh2), full),                     # W2 block-diag
                pl.BlockSpec((1, wh2), full),                       # b2 (tiled)
                pl.BlockSpec((wh2, pack), full),                    # W3 block-diag
                pl.BlockSpec(memory_space=pltpu.MemorySpace.SMEM),  # b3 scalar
            ],
            out_specs=pl.BlockSpec((tm_p, pack), lambda i: (i, 0)),
        ),
        compiler_params=pltpu.CompilerParams(
            dimension_semantics=("parallel",)),
        cost_estimate=cost,
    )(xp, w1bd, b1t, w2bd, b2t, w3bd, b3r)

    out = out_p.reshape(n_p * pack, 1)   # (p, r) -> logical row p*pack + r
    if pad:
        out = out[:n]
    return out.reshape(*lead_shape, 1)


def init_set_scorer_params(key, d_model, hidden_dim):
    """Deterministic init; PyTorch nn.Linear weight convention (out, in)."""
    half = floor(hidden_dim / 2)
    k1, k2, k3, k4, k5, k6 = jax.random.split(key, 6)
    s1 = 1.0 / (d_model ** 0.5)
    s2 = 1.0 / (hidden_dim ** 0.5)
    s3 = 1.0 / (half ** 0.5)
    w1 = jax.random.uniform(k1, (hidden_dim, d_model), jnp.float32, -s1, s1)
    b1 = jax.random.uniform(k2, (hidden_dim,), jnp.float32, -s1, s1)
    w2 = jax.random.uniform(k3, (half, hidden_dim), jnp.float32, -s2, s2)
    b2 = jax.random.uniform(k4, (half,), jnp.float32, -s2, s2)
    w3 = jax.random.uniform(k5, (1, half), jnp.float32, -s3, s3)
    b3 = jax.random.uniform(k6, (1,), jnp.float32, -s3, s3)
    return (w1, b1, w2, b2, w3, b3)


def _reference_forward(x, params, *, mxu_dtype=jnp.float32):
    """Plain-JAX reference (mirrors the PyTorch Sequential, eval mode).

    With mxu_dtype=bf16 it applies the same operand roundings the fast kernel
    path uses (accumulation stays f32), so it is an apples-to-apples check.
    """
    w1, b1, w2, b2, w3, b3 = params
    c = mxu_dtype
    mm = lambda a, w: jnp.dot(a.astype(c), w.T.astype(c),
                              preferred_element_type=jnp.float32)
    h = jnp.maximum(mm(x, w1) + b1, 0.0)
    h = jnp.maximum(mm(h, w2) + b2, 0.0)
    return mm(h, w3) + b3


if __name__ == "__main__":
    key = jax.random.PRNGKey(0)
    k_x, k_p, k_x2 = jax.random.split(key, 3)

    # Shapes consistent with the module: batch=2, seq(set size)=8,
    # embedding_dim=32, scorer hidden_dim=32.
    batch, seq, d_model, hidden_dim = 2, 8, 32, 32
    params = init_set_scorer_params(k_p, d_model, hidden_dim)

    prepared_f32 = prepare_set_scorer_params(params, mxu_dtype=jnp.float32)
    prepared_bf16 = prepare_set_scorer_params(params, mxu_dtype=jnp.bfloat16)

    # Test 1: tiny input (single block), exact f32 path == module numerics.
    x = jax.random.normal(k_x, (batch, seq, d_model), jnp.float32)
    out = jax.block_until_ready(set_scorer_forward(x, prepared_f32))
    ref = _reference_forward(x, params)
    assert out.shape == (batch, seq, 1), out.shape
    assert jnp.allclose(out, ref, atol=1e-5, rtol=1e-5), \
        float(jnp.max(jnp.abs(out - ref)))

    # Test 2: multi-step grid with a balanced, partial last block
    # (3*700 = 2100 rows -> 525 packed rows -> two ~264-row blocks).
    x2 = jax.random.normal(k_x2, (3, 700, d_model), jnp.float32)
    out2 = jax.block_until_ready(set_scorer_forward(x2, prepared_f32))
    ref2 = _reference_forward(x2, params)
    assert out2.shape == (3, 700, 1), out2.shape
    assert jnp.allclose(out2, ref2, atol=1e-4, rtol=1e-4), \
        float(jnp.max(jnp.abs(out2 - ref2)))

    # Test 3: opt-in bf16 MXU-operand path (f32 accumulation), checked against
    # a reference that applies the same bf16 roundings.
    out3 = jax.block_until_ready(set_scorer_forward(x2, prepared_bf16))
    ref3 = _reference_forward(x2, params, mxu_dtype=jnp.bfloat16)
    assert jnp.allclose(out3, ref3, atol=1e-2, rtol=1e-2), \
        float(jnp.max(jnp.abs(out3 - ref3)))

    print("KERNEL_OK")
</pallas_src>

<mosaic_0001>
module attributes {stable_mosaic.version = 11 : i64} {
  func.func @_set_scorer_kernel(%arg0: i32, %arg1: memref<4x128xf32, #tpu.memory_space<vmem>>, %arg2: memref<128x128xf32, #tpu.memory_space<vmem>>, %arg3: memref<1x128xf32, #tpu.memory_space<vmem>>, %arg4: memref<128x64xf32, #tpu.memory_space<vmem>>, %arg5: memref<1x64xf32, #tpu.memory_space<vmem>>, %arg6: memref<64x4xf32, #tpu.memory_space<vmem>>, %arg7: memref<1xf32, #tpu.memory_space<smem>>, %arg8: memref<4x4xf32, #tpu.memory_space<vmem>>) attributes {dimension_semantics = [#tpu.dimension_semantics<parallel>], iteration_bounds = array<i64: 1>, scalar_prefetch = 0 : i64, scratch_operands = 0 : i64, tpu.core_type = #tpu.core_type<tc>, window_params = [{transform_indices = @transform_0, window_bounds = array<i64: 4, 128>}, {pipeline_mode = #tpu.pipeline_mode<synchronous>, transform_indices = @transform_1, window_bounds = array<i64: 128, 128>}, {pipeline_mode = #tpu.pipeline_mode<synchronous>, transform_indices = @transform_2, window_bounds = array<i64: 1, 128>}, {pipeline_mode = #tpu.pipeline_mode<synchronous>, transform_indices = @transform_3, window_bounds = array<i64: 128, 64>}, {pipeline_mode = #tpu.pipeline_mode<synchronous>, transform_indices = @transform_4, window_bounds = array<i64: 1, 64>}, {pipeline_mode = #tpu.pipeline_mode<synchronous>, transform_indices = @transform_5, window_bounds = array<i64: 64, 4>}, {transform_indices = @transform_6, window_bounds = array<i64: 1>}, {transform_indices = @transform_7, window_bounds = array<i64: 4, 4>}]} {
    %c0 = arith.constant 0 : index
    %c0_0 = arith.constant 0 : index
    %0 = vector.load %arg1[%c0, %c0_0] : memref<4x128xf32, #tpu.memory_space<vmem>>, vector<4x128xf32>
    %c0_1 = arith.constant 0 : index
    %c0_2 = arith.constant 0 : index
    %1 = vector.load %arg2[%c0_1, %c0_2] : memref<128x128xf32, #tpu.memory_space<vmem>>, vector<128x128xf32>
    %cst = arith.constant dense<0.000000e+00> : vector<4x128xf32>
    %2 = tpu.matmul %0, %1, %cst {dimension_numbers = #tpu.dot_dimension_numbers<[1], [0], [0], [1], [0, 0, 1, 1], [], []>} : vector<4x128xf32>, vector<128x128xf32>, vector<4x128xf32> -> vector<4x128xf32>
    %c0_3 = arith.constant 0 : index
    %c0_4 = arith.constant 0 : index
    %3 = vector.load %arg3[%c0_3, %c0_4] : memref<1x128xf32, #tpu.memory_space<vmem>>, vector<1x128xf32>
    %4 = vector.broadcast %3 : vector<1x128xf32> to vector<4x128xf32>
    %5 = arith.addf %2, %4 : vector<4x128xf32>
    %cst_5 = arith.constant 0.000000e+00 : f32
    %6 = vector.broadcast %cst_5 : f32 to vector<4x128xf32>
    %7 = arith.maximumf %5, %6 : vector<4x128xf32>
    %c0_6 = arith.constant 0 : index
    %c0_7 = arith.constant 0 : index
    %8 = vector.load %arg4[%c0_6, %c0_7] : memref<128x64xf32, #tpu.memory_space<vmem>>, vector<128x64xf32>
    %cst_8 = arith.constant dense<0.000000e+00> : vector<4x64xf32>
    %9 = tpu.matmul %7, %8, %cst_8 {dimension_numbers = #tpu.dot_dimension_numbers<[1], [0], [0], [1], [0, 0, 1, 1], [], []>} : vector<4x128xf32>, vector<128x64xf32>, vector<4x64xf32> -> vector<4x64xf32>
    %c0_9 = arith.constant 0 : index
    %c0_10 = arith.constant 0 : index
    %10 = vector.load %arg5[%c0_9, %c0_10] : memref<1x64xf32, #tpu.memory_space<vmem>>, vector<1x64xf32>
    %11 = vector.broadcast %10 : vector<1x64xf32> to vector<4x64xf32>
    %12 = arith.addf %9, %11 : vector<4x64xf32>
    %cst_11 = arith.constant 0.000000e+00 : f32
    %13 = vector.broadcast %cst_11 : f32 to vector<4x64xf32>
    %14 = arith.maximumf %12, %13 : vector<4x64xf32>
    %c0_12 = arith.constant 0 : index
    %c0_13 = arith.constant 0 : index
    %15 = vector.load %arg6[%c0_12, %c0_13] : memref<64x4xf32, #tpu.memory_space<vmem>>, vector<64x4xf32>
    %cst_14 = arith.constant dense<0.000000e+00> : vector<4x4xf32>
    %16 = tpu.matmul %14, %15, %cst_14 {dimension_numbers = #tpu.dot_dimension_numbers<[1], [0], [0], [1], [0, 0, 1, 1], [], []>} : vector<4x64xf32>, vector<64x4xf32>, vector<4x4xf32> -> vector<4x4xf32>
    %c0_15 = arith.constant 0 : index
    %17 = memref.load %arg7[%c0_15] : memref<1xf32, #tpu.memory_space<smem>>
    %18 = vector.broadcast %17 : f32 to vector<4x4xf32>
    %19 = arith.addf %16, %18 : vector<4x4xf32>
    %c0_16 = arith.constant 0 : index
    %c0_17 = arith.constant 0 : index
    %20 = vector.load %arg8[%c0_16, %c0_17] : memref<4x4xf32, #tpu.memory_space<vmem>>, vector<4x4xf32>
    tpu.vector_store %arg8[%c0_16, %c0_17], %19 {strides = array<i32>} : memref<4x4xf32, #tpu.memory_space<vmem>>, vector<4x4xf32>,
    return
  }
  func.func @transform_0(%arg0: i32) -> (i32, i32) {
    %c0_i32 = arith.constant 0 : i32
    %c0_i32_0 = arith.constant 0 : i32
    return %arg0, %c0_i32 : i32, i32
  }
  func.func @transform_1(%arg0: i32) -> (i32, i32) {
    %c0_i32 = arith.constant 0 : i32
    %c0_i32_0 = arith.constant 0 : i32
    %c0_i32_1 = arith.constant 0 : i32
    return %c0_i32, %c0_i32_0 : i32, i32
  }
  func.func @transform_2(%arg0: i32) -> (i32, i32) {
    %c0_i32 = arith.constant 0 : i32
    %c0_i32_0 = arith.constant 0 : i32
    %c0_i32_1 = arith.constant 0 : i32
    return %c0_i32, %c0_i32_0 : i32, i32
  }
  func.func @transform_3(%arg0: i32) -> (i32, i32) {
    %c0_i32 = arith.constant 0 : i32
    %c0_i32_0 = arith.constant 0 : i32
    %c0_i32_1 = arith.constant 0 : i32
    return %c0_i32, %c0_i32_0 : i32, i32
  }
  func.func @transform_4(%arg0: i32) -> (i32, i32) {
    %c0_i32 = arith.constant 0 : i32
    %c0_i32_0 = arith.constant 0 : i32
    %c0_i32_1 = arith.constant 0 : i32
    return %c0_i32, %c0_i32_0 : i32, i32
  }
  func.func @transform_5(%arg0: i32) -> (i32, i32) {
    %c0_i32 = arith.constant 0 : i32
    %c0_i32_0 = arith.constant 0 : i32
    %c0_i32_1 = arith.constant 0 : i32
    return %c0_i32, %c0_i32_0 : i32, i32
  }
  func.func @transform_6(%arg0: i32) -> i32 {
    %c0_i32 = arith.constant 0 : i32
    %c0_i32_0 = arith.constant 0 : i32
    return %c0_i32 : i32
  }
  func.func @transform_7(%arg0: i32) -> (i32, i32) {
    %c0_i32 = arith.constant 0 : i32
    %c0_i32_0 = arith.constant 0 : i32
    return %arg0, %c0_i32 : i32, i32
  }
}

</mosaic_0001>

<llo_original>
// kernel: tpu_custom_call.1
$region0: #{tpu_custom_call.1}
  #allocation0 [shape = 'u32[]', space=smem, size = 0x4, offset = 0x4, fixed_abs, tag = 'smem constant byte address 0x4 - core index']
  #allocation1 [shape = 'u32[144,128]{1,0:T(1,128)}', space=vmem, size = 0x12000, scoped, tag = 'internal scratch']
  #allocation2 [shape = 'f32[1]{0:T(128)S(6)}', space=smem, size = 0x200, scoped, tag = 'scoped memory for tpu_custom_call.1']
  %s0 = inlined_call_operand.vmem [shape: f32[4,128], index: 0, kind: input, shape index: {}]
  %s1 = inlined_call_operand.vmem [shape: f32[128,128], index: 1, kind: input, shape index: {}]
  %s2 = inlined_call_operand.vmem [shape: f32[1,128], index: 2, kind: input, shape index: {}]
  %s3 = inlined_call_operand.vmem [shape: f32[128,64], index: 3, kind: input, shape index: {}]
  %s4 = inlined_call_operand.vmem [shape: f32[1,64], index: 4, kind: input, shape index: {}]
  %s5 = inlined_call_operand.vmem [shape: f32[64,4], index: 5, kind: input, shape index: {}]
  %s6 = inlined_call_operand.<no memory space> [shape: f32[1], index: 6, kind: input, shape index: {}]
  %s7 = inlined_call_operand.hbm [shape: f32[4,4], index: 7, kind: output, shape index: {}]
  %s8 = sld [smem:[#allocation0]]
  $region38: #{tpu_custom_call.1} parent=0
    _
  %s10 = ssub.s32 1, %s8
  %s11 = scalar_select 0, %s10, %s8
  %12 = sst [smem:[#allocation2]] %s6
  $region1: #{tpu_custom_call.1} parent=0
    #allocation3 [shape = 'u8[2048]{0}', space=vmem, size = 0x800, scoped, tag = 'output window, operand 0, single buffered']
    #allocation4 [shape = 's32[1]{0}', space=sflag, size = 0x4, scoped, tag = 'scoped memory for tpu_custom_call.1']
    %13 = vsyncpa [#allocation4], 0
    // Predicated region
    $region2: #{tpu_custom_call.1} parent=1 // pred_check
      _
    $region3: #{tpu_custom_call.1} parent=1 // pred_check_branch
      %15 = sbr.rel (0) target = $region5
    $region4: #{tpu_custom_call.1} parent=1 // pred_region
      _
    $region5: #{tpu_custom_call.1} parent=1 // pred_fallthru
      _
    // Predicated region
    $region6: #{tpu_custom_call.1} parent=1 // pred_check
      _
    $region7: #{tpu_custom_call.1} parent=1 // pred_check_branch
      %17 = sbr.rel (0) target = $region9
    $region8: #{tpu_custom_call.1} parent=1 // pred_region
      _
    $region9: #{tpu_custom_call.1} parent=1 // pred_fallthru
      _
    // Predicated region
    $region10: #{tpu_custom_call.1} parent=1 // pred_check
      _
    $region11: #{tpu_custom_call.1} parent=1 // pred_check_branch
      %19 = sbr.rel (0) target = $region13
    $region12: #{tpu_custom_call.1} parent=1 // pred_region
      _
    $region13: #{tpu_custom_call.1} parent=1 // pred_fallthru
      _
    // Predicated region
    $region14: #{tpu_custom_call.1} parent=1 // pred_check
      _
    $region15: #{tpu_custom_call.1} parent=1 // pred_check_branch
      %21 = sbr.rel (0) target = $region17
    $region16: #{tpu_custom_call.1} parent=1 // pred_region
      _
    $region17: #{tpu_custom_call.1} parent=1 // pred_fallthru
      _
    // Predicated region
    $region18: #{tpu_custom_call.1} parent=1 // pred_check
      _
    $region19: #{tpu_custom_call.1} parent=1 // pred_check_branch
      %23 = sbr.rel (0) target = $region21
    $region20: #{tpu_custom_call.1} parent=1 // pred_region
      _
    $region21: #{tpu_custom_call.1} parent=1 // pred_fallthru
      _
    // Predicated region
    $region22: #{tpu_custom_call.1} parent=1 // pred_check
      _
    $region23: #{tpu_custom_call.1} parent=1 // pred_check_branch
      %25 = sbr.rel (0) target = $region25
    $region24: #{tpu_custom_call.1} parent=1 // pred_region
      _
    $region25: #{tpu_custom_call.1} parent=1 // pred_fallthru
      _
    // Predicated region
    $region26: #{tpu_custom_call.1} parent=1 // pred_check
      _
    $region27: #{tpu_custom_call.1} parent=1 // pred_check_branch
      %27 = sbr.rel (0) target = $region29
    $region28: #{tpu_custom_call.1} parent=1 // pred_region
      _
    $region29: #{tpu_custom_call.1} parent=1 // pred_fallthru
      _
    %v28 = vld [vmem:[%s0] sm:$0xf]
    %v29 = vld [vmem:[%s1] sm:$0xff]
    %v30 = vld [vmem:[%s1 + $0x8] sm:$0xff]
    %v31 = vld [vmem:[%s1 + $0x10] sm:$0xff]
    %v32 = vld [vmem:[%s1 + $0x18] sm:$0xff]
    %v33 = vld [vmem:[%s1 + $0x20] sm:$0xff]
    %v34 = vld [vmem:[%s1 + $0x28] sm:$0xff]
    %v35 = vld [vmem:[%s1 + $0x30] sm:$0xff]
    %v36 = vld [vmem:[%s1 + $0x38] sm:$0xff]
    %v37 = vld [vmem:[%s1 + $0x40] sm:$0xff]
    %v38 = vld [vmem:[%s1 + $0x48] sm:$0xff]
    %v39 = vld [vmem:[%s1 + $0x50] sm:$0xff]
    %v40 = vld [vmem:[%s1 + $0x58] sm:$0xff]
    %v41 = vld [vmem:[%s1 + $0x60] sm:$0xff]
    %v42 = vld [vmem:[%s1 + $0x68] sm:$0xff]
    %v43 = vld [vmem:[%s1 + $0x70] sm:$0xff]
    %v44 = vld [vmem:[%s1 + $0x78] sm:$0xff]
    %v45 = vld [vmem:[%s2] sm:$0x1]
    %v47 = vlaneseq
    %v48 = vshrl.u32 %v47, 7
    %v49 = vsub.s32 0, %v48
    %v50 = vrot.slane %v45, %v49
    %52 = vmatprep.subr.mxu0 0.0
    %53 = vmatpush1.msra.mxu0 %v44
    %54 = vmatprep.subr.mxu0 0.0
    %55 = vmatpush1.msra.mxu0 %v43
    %56 = vmatprep.subr.mxu0 0.0
    %57 = vmatpush1.msra.mxu0 %v42
    %58 = vmatprep.subr.mxu0 0.0
    %59 = vmatpush1.msra.mxu0 %v41
    %60 = vmatprep.subr.mxu0 0.0
    %61 = vmatpush1.msra.mxu0 %v40
    %62 = vmatprep.subr.mxu0 0.0
    %63 = vmatpush1.msra.mxu0 %v39
    %64 = vmatprep.subr.mxu0 0.0
    %65 = vmatpush1.msra.mxu0 %v38
    %66 = vmatprep.subr.mxu0 0.0
    %67 = vmatpush1.msra.mxu0 %v37
    %68 = vmatprep.subr.mxu0 0.0
    %69 = vmatpush1.msra.mxu0 %v36
    %70 = vmatprep.subr.mxu0 0.0
    %71 = vmatpush1.msra.mxu0 %v35
    %72 = vmatprep.subr.mxu0 0.0
    %73 = vmatpush1.msra.mxu0 %v34
    %74 = vmatprep.subr.mxu0 0.0
    %75 = vmatpush1.msra.mxu0 %v33
    %76 = vmatprep.subr.mxu0 0.0
    %77 = vmatpush1.msra.mxu0 %v32
    %78 = vmatprep.subr.mxu0 0.0
    %79 = vmatpush1.msra.mxu0 %v31
    %80 = vmatprep.subr.mxu0 0.0
    %81 = vmatpush1.msra.mxu0 %v30
    %82 = vmatprep.subr.mxu0 0.0
    %83 = vmatpush1.msra.mxu0 %v29
    %84 = vmatprep.subr.mxu0 0.0
    %85 = vmatpush2.msra.mxu0 0.0
    %86 = vmatprep.subr.mxu0 0.0
    %87 = vmatpush2.msra.mxu0 0.0
    %88 = vmatprep.subr.mxu0 0.0
    %89 = vmatpush2.msra.mxu0 0.0
    %90 = vmatprep.subr.mxu0 0.0
    %91 = vmatpush2.msra.mxu0 0.0
    %92 = vmatprep.subr.mxu0 0.0
    %93 = vmatpush2.msra.mxu0 0.0
    %94 = vmatprep.subr.mxu0 0.0
    %95 = vmatpush2.msra.mxu0 0.0
    %96 = vmatprep.subr.mxu0 0.0
    %97 = vmatpush2.msra.mxu0 0.0
    %98 = vmatprep.subr.mxu0 0.0
    %99 = vmatpush2.msra.mxu0 0.0
    %100 = vmatprep.subr.mxu0 0.0
    %101 = vmatpush2.msra.mxu0 0.0
    %102 = vmatprep.subr.mxu0 0.0
    %103 = vmatpush2.msra.mxu0 0.0
    %104 = vmatprep.subr.mxu0 0.0
    %105 = vmatpush2.msra.mxu0 0.0
    %106 = vmatprep.subr.mxu0 0.0
    %107 = vmatpush2.msra.mxu0 0.0
    %108 = vmatprep.subr.mxu0 0.0
    %109 = vmatpush2.msra.mxu0 0.0
    %110 = vmatprep.subr.mxu0 0.0
    %111 = vmatpush2.msra.mxu0 0.0
    %112 = vmatprep.subr.mxu0 0.0
    %113 = vmatpush2.msra.mxu0 0.0
    %114 = vmatprep.subr.mxu0 0.0
    %115 = vmatpush2.msra.mxu0 0.0
    %116 = vmatprep.mubr.f32.mxu0 0.0
    %117 = vmatmul.mubr.f32.gmra.mxu0 %v28
    %v118 = vpop.f32.mrf.mxu0
    %v119 = vadd.f32 %v50, %v118
    %v120 = vpop.f32.mrf.mxu0
    %121 = vdwg.mxu0
    %v122 = vmax.f32 %v119, 0.0
    %v123 = vld [vmem:[%s3] sm:$0xff]
    %v124 = vld [vmem:[%s3 + $0x8] sm:$0xff]
    %v125 = vld [vmem:[%s3 + $0x10] sm:$0xff]
    %v126 = vld [vmem:[%s3 + $0x18] sm:$0xff]
    %v127 = vld [vmem:[%s3 + $0x20] sm:$0xff]
    %v128 = vld [vmem:[%s3 + $0x28] sm:$0xff]
    %v129 = vld [vmem:[%s3 + $0x30] sm:$0xff]
    %v130 = vld [vmem:[%s3 + $0x38] sm:$0xff]
    %v131 = vld [vmem:[%s3 + $0x40] sm:$0xff]
    %v132 = vld [vmem:[%s3 + $0x48] sm:$0xff]
    %v133 = vld [vmem:[%s3 + $0x50] sm:$0xff]
    %v134 = vld [vmem:[%s3 + $0x58] sm:$0xff]
    %v135 = vld [vmem:[%s3 + $0x60] sm:$0xff]
    %v136 = vld [vmem:[%s3 + $0x68] sm:$0xff]
    %v137 = vld [vmem:[%s3 + $0x70] sm:$0xff]
    %v138 = vld [vmem:[%s3 + $0x78] sm:$0xff]
    %v139 = vld [vmem:[%s4] sm:$0x1]
    %v141 = vlaneseq
    %v142 = vshrl.u32 %v141, 7
    %v143 = vsub.s32 0, %v142
    %v144 = vrot.slane %v139, %v143
    %146 = vmatprep.subr.mxu0 0.0
    %147 = vmatpush1.msra.mxu0 %v138
    %148 = vmatprep.subr.mxu0 0.0
    %149 = vmatpush1.msra.mxu0 %v137
    %150 = vmatprep.subr.mxu0 0.0
    %151 = vmatpush1.msra.mxu0 %v136
    %152 = vmatprep.subr.mxu0 0.0
    %153 = vmatpush1.msra.mxu0 %v135
    %154 = vmatprep.subr.mxu0 0.0
    %155 = vmatpush1.msra.mxu0 %v134
    %156 = vmatprep.subr.mxu0 0.0
    %157 = vmatpush1.msra.mxu0 %v133
    %158 = vmatprep.subr.mxu0 0.0
    %159 = vmatpush1.msra.mxu0 %v132
    %160 = vmatprep.subr.mxu0 0.0
    %161 = vmatpush1.msra.mxu0 %v131
    %162 = vmatprep.subr.mxu0 0.0
    %163 = vmatpush1.msra.mxu0 %v130
    %164 = vmatprep.subr.mxu0 0.0
    %165 = vmatpush1.msra.mxu0 %v129
    %166 = vmatprep.subr.mxu0 0.0
    %167 = vmatpush1.msra.mxu0 %v128
    %168 = vmatprep.subr.mxu0 0.0
    %169 = vmatpush1.msra.mxu0 %v127
    %170 = vmatprep.subr.mxu0 0.0
    %171 = vmatpush1.msra.mxu0 %v126
    %172 = vmatprep.subr.mxu0 0.0
    %173 = vmatpush1.msra.mxu0 %v125
    %174 = vmatprep.subr.mxu0 0.0
    %175 = vmatpush1.msra.mxu0 %v124
    %176 = vmatprep.subr.mxu0 0.0
    %177 = vmatpush1.msra.mxu0 %v123
    %178 = vmatprep.subr.mxu0 0.0
    %179 = vmatpush2.msra.mxu0 0.0
    %180 = vmatprep.subr.mxu0 0.0
    %181 = vmatpush2.msra.mxu0 0.0
    %182 = vmatprep.subr.mxu0 0.0
    %183 = vmatpush2.msra.mxu0 0.0
    %184 = vmatprep.subr.mxu0 0.0
    %185 = vmatpush2.msra.mxu0 0.0
    %186 = vmatprep.subr.mxu0 0.0
    %187 = vmatpush2.msra.mxu0 0.0
    %188 = vmatprep.subr.mxu0 0.0
    %189 = vmatpush2.msra.mxu0 0.0
    %190 = vmatprep.subr.mxu0 0.0
    %191 = vmatpush2.msra.mxu0 0.0
    %192 = vmatprep.subr.mxu0 0.0
    %193 = vmatpush2.msra.mxu0 0.0
    %194 = vmatprep.subr.mxu0 0.0
    %195 = vmatpush2.msra.mxu0 0.0
    %196 = vmatprep.subr.mxu0 0.0
    %197 = vmatpush2.msra.mxu0 0.0
    %198 = vmatprep.subr.mxu0 0.0
    %199 = vmatpush2.msra.mxu0 0.0
    %200 = vmatprep.subr.mxu0 0.0
    %201 = vmatpush2.msra.mxu0 0.0
    %202 = vmatprep.subr.mxu0 0.0
    %203 = vmatpush2.msra.mxu0 0.0
    %204 = vmatprep.subr.mxu0 0.0
    %205 = vmatpush2.msra.mxu0 0.0
    %206 = vmatprep.subr.mxu0 0.0
    %207 = vmatpush2.msra.mxu0 0.0
    %208 = vmatprep.subr.mxu0 0.0
    %209 = vmatpush2.msra.mxu0 0.0
    %210 = vmatprep.mubr.f32.mxu0 0.0
    %211 = vmatmul.mubr.f32.gmra.mxu0 %v122
    %v212 = vpop.f32.mrf.mxu0
    %v213 = vadd.f32 %v144, %v212
    %v214 = vpop.f32.mrf.mxu0
    %215 = vdwg.mxu0
    %v216 = vmax.f32 %v213, 0.0
    %v217 = vld [vmem:[%s5] sm:$0xff]
    %v218 = vld [vmem:[%s5 + $0x8] sm:$0xff]
    %v219 = vld [vmem:[%s5 + $0x10] sm:$0xff]
    %v220 = vld [vmem:[%s5 + $0x18] sm:$0xff]
    %v221 = vld [vmem:[%s5 + $0x20] sm:$0xff]
    %v222 = vld [vmem:[%s5 + $0x28] sm:$0xff]
    %v223 = vld [vmem:[%s5 + $0x30] sm:$0xff]
    %v224 = vld [vmem:[%s5 + $0x38] sm:$0xff]
    %s225 = sld [smem:[#allocation2]]
    %v226 = vstv %s225
    %vm227 = vcmask 523264
    %v229 = vsel %vm227, %v216, 0
    %231 = vmatprep.subr.mxu0 0.0
    %232 = vmatpush1.msra.mxu0 0.0
    %233 = vmatprep.subr.mxu0 0.0
    %234 = vmatpush1.msra.mxu0 0.0
    %235 = vmatprep.subr.mxu0 0.0
    %236 = vmatpush1.msra.mxu0 0.0
    %237 = vmatprep.subr.mxu0 0.0
    %238 = vmatpush1.msra.mxu0 0.0
    %239 = vmatprep.subr.mxu0 0.0
    %240 = vmatpush1.msra.mxu0 0.0
    %241 = vmatprep.subr.mxu0 0.0
    %242 = vmatpush1.msra.mxu0 0.0
    %243 = vmatprep.subr.mxu0 0.0
    %244 = vmatpush1.msra.mxu0 0.0
    %245 = vmatprep.subr.mxu0 0.0
    %246 = vmatpush1.msra.mxu0 0.0
    %247 = vmatprep.subr.mxu0 0.0
    %248 = vmatpush1.msra.mxu0 %v224
    %249 = vmatprep.subr.mxu0 0.0
    %250 = vmatpush1.msra.mxu0 %v223
    %251 = vmatprep.subr.mxu0 0.0
    %252 = vmatpush1.msra.mxu0 %v222
    %253 = vmatprep.subr.mxu0 0.0
    %254 = vmatpush1.msra.mxu0 %v221
    %255 = vmatprep.subr.mxu0 0.0
    %256 = vmatpush1.msra.mxu0 %v220
    %257 = vmatprep.subr.mxu0 0.0
    %258 = vmatpush1.msra.mxu0 %v219
    %259 = vmatprep.subr.mxu0 0.0
    %260 = vmatpush1.msra.mxu0 %v218
    %261 = vmatprep.subr.mxu0 0.0
    %262 = vmatpush1.msra.mxu0 %v217
    %263 = vmatprep.subr.mxu0 0.0
    %264 = vmatpush2.msra.mxu0 0.0
    %265 = vmatprep.subr.mxu0 0.0
    %266 = vmatpush2.msra.mxu0 0.0
    %267 = vmatprep.subr.mxu0 0.0
    %268 = vmatpush2.msra.mxu0 0.0
    %269 = vmatprep.subr.mxu0 0.0
    %270 = vmatpush2.msra.mxu0 0.0
    %271 = vmatprep.subr.mxu0 0.0
    %272 = vmatpush2.msra.mxu0 0.0
    %273 = vmatprep.subr.mxu0 0.0
    %274 = vmatpush2.msra.mxu0 0.0
    %275 = vmatprep.subr.mxu0 0.0
    %276 = vmatpush2.msra.mxu0 0.0
    %277 = vmatprep.subr.mxu0 0.0
    %278 = vmatpush2.msra.mxu0 0.0
    %279 = vmatprep.subr.mxu0 0.0
    %280 = vmatpush2.msra.mxu0 0.0
    %281 = vmatprep.subr.mxu0 0.0
    %282 = vmatpush2.msra.mxu0 0.0
    %283 = vmatprep.subr.mxu0 0.0
    %284 = vmatpush2.msra.mxu0 0.0
    %285 = vmatprep.subr.mxu0 0.0
    %286 = vmatpush2.msra.mxu0 0.0
    %287 = vmatprep.subr.mxu0 0.0
    %288 = vmatpush2.msra.mxu0 0.0
    %289 = vmatprep.subr.mxu0 0.0
    %290 = vmatpush2.msra.mxu0 0.0
    %291 = vmatprep.subr.mxu0 0.0
    %292 = vmatpush2.msra.mxu0 0.0
    %293 = vmatprep.subr.mxu0 0.0
    %294 = vmatpush2.msra.mxu0 0.0
    %295 = vmatprep.mubr.f32.mxu0 0.0
    %296 = vmatmul.mubr.f32.gmra.mxu0 %v229
    %v297 = vpop.f32.mrf.mxu0
    %v298 = vadd.f32 %v226, %v297
    %v299 = vpop.f32.mrf.mxu0
    %300 = vdwg.mxu0
    %vm301 = vcmask 27648
    %302 = vst.msk [vmem:[#allocation3] sm:$0xf] %vm301, %v298
    // Predicated region
    $region30: #{tpu_custom_call.1} parent=1 // pred_check
      _
    $region31: #{tpu_custom_call.1} parent=1 // pred_check_branch
      %304 = sbr.rel (0) target = $region33
    $region32: #{tpu_custom_call.1} parent=1 // pred_region
      %s306 = ssub.s32 64, 64
      %307 = vsyncadd [#allocation4], %s306
      %s309 = sshll.u32 [#allocation3], 4
      %s310 = int_to_ptr.vmem [resolvable:$true] %s309
      %312 = dma.vmem_to_hbm [thread:$0]  %s310, 64, %s7, [#allocation4]
    $region33: #{tpu_custom_call.1} parent=1 // pred_fallthru
      _
    // Predicated region
    $region34: #{tpu_custom_call.1} parent=1 // pred_check
      _
    $region35: #{tpu_custom_call.1} parent=1 // pred_check_branch
      %314 = sbr.rel (0) target = $region37
    $region36: #{tpu_custom_call.1} parent=1 // pred_region
      %315 = dma.done [#allocation4], 64
    $region37: #{tpu_custom_call.1} parent=1 // pred_fallthru
      _
    %316 = vsyncpa [#allocation4], 1

</llo_original>
